<compile_context>
chip_gen: v5e
topology: v5e:2x2
jax: 0.10.0
libtpu: 0.0.40
codegen_flags: <defaults>
</compile_context>

<pallas_src>
import functools
import math

import jax
import jax.numpy as jnp
from jax.experimental import pallas as pl
from jax.experimental.pallas import tpu as pltpu


LANE = 128   # vreg lane width
SUB = 16     # bf16 sublane packing (rows)


def _round_up(n, m):
    return ((n + m - 1) // m) * m


def _cdiv(a, b):
    return (a + b - 1) // b


# --------------------------------------------------------------------------
# Kernel body: fused 3-layer MLP, bf16 MXU inputs, f32 accumulate + epilogue.
# --------------------------------------------------------------------------
def _ddpg_actor_kernel(x_ref, w1_ref, b1_ref, w2_ref, b2_ref, w3_ref, b3_ref,
                       o_ref):
    x = x_ref[...].astype(jnp.bfloat16)            # in-kernel cast (free-ish)

    h1 = jnp.dot(x, w1_ref[...], preferred_element_type=jnp.float32)
    h1 = jnp.maximum(h1 + b1_ref[...], 0.0)

    h2 = jnp.dot(h1.astype(jnp.bfloat16), w2_ref[...],
                 preferred_element_type=jnp.float32)
    h2 = jnp.maximum(h2 + b2_ref[...], 0.0)

    out = jnp.dot(h2.astype(jnp.bfloat16), w3_ref[...],
                  preferred_element_type=jnp.float32)
    out = jnp.tanh(out + b3_ref[...])              # f32 epilogue (v5e-safe)
    o_ref[...] = out.astype(o_ref.dtype)


# --------------------------------------------------------------------------
# Batch tiling: balanced tiles, bounded padding waste, >=4 even grid steps
# for v7x's two TensorCores when the batch is large enough.
# --------------------------------------------------------------------------
def _choose_batch_tiling(B, batch_tile):
    MIN_TC_TILE = 128
    Bp0 = _round_up(max(B, 1), SUB)

    nsteps = _cdiv(Bp0, max(batch_tile, SUB))
    # v7x megacore: aim for >=4 grid steps (>=2 per TC), keep the count even,
    # and never shrink tiles below MIN_TC_TILE rows to get there.
    if Bp0 >= 4 * MIN_TC_TILE:
        nsteps = max(nsteps, 4)
    if nsteps > 1 and nsteps % 2 == 1:
        nsteps += 1

    raw = _cdiv(Bp0, nsteps)
    if raw >= 2048:
        align = 256      # full MXU LHS passes; <=12.5% pad in the worst case
    elif raw >= 1024:
        align = 128
    else:
        align = SUB      # bound pad waste to <16 rows per tile
    bt = _round_up(raw, align)

    nsteps = _cdiv(Bp0, bt)
    Bp = nsteps * bt
    return bt, Bp, nsteps


# --------------------------------------------------------------------------
# One-time parameter preparation (hoisted out of the per-call path).
# --------------------------------------------------------------------------
def prepare_params(params):
    """Cast weights to bf16 and zero-pad F1/F2/A to lane width. Call once."""
    w1, b1 = params["w1"], params["b1"]
    w2, b2 = params["w2"], params["b2"]
    w3, b3 = params["w3"], params["b3"]
    S, F1 = w1.shape
    F2 = w2.shape[1]
    A = w3.shape[1]
    F1p, F2p, Ap = (_round_up(d, LANE) for d in (F1, F2, A))

    def pad2(w, rpad, cpad):
        return jnp.pad(w, ((0, rpad), (0, cpad)))

    w1p = pad2(w1, 0, F1p - F1).astype(jnp.bfloat16)
    w2p = pad2(w2, F1p - F1, F2p - F2).astype(jnp.bfloat16)
    w3p = pad2(w3, F2p - F2, Ap - A).astype(jnp.bfloat16)
    b1p = jnp.pad(b1.reshape(1, -1), ((0, 0), (0, F1p - F1))).astype(jnp.float32)
    b2p = jnp.pad(b2.reshape(1, -1), ((0, 0), (0, F2p - F2))).astype(jnp.float32)
    b3p = jnp.pad(b3.reshape(1, -1), ((0, 0), (0, Ap - A))).astype(jnp.float32)
    return dict(w1=w1p, b1=b1p, w2=w2p, b2=b2p, w3=w3p, b3=b3p)


# --------------------------------------------------------------------------
# Forward pass (expects prepare_params() output).
# --------------------------------------------------------------------------
@functools.partial(jax.jit,
                   static_argnames=("action_size", "batch_tile", "out_dtype"))
def ddpg_actor_forward(x, prepared, *, action_size, batch_tile=1024,
                       out_dtype=jnp.float32):
    """x: [B, state_size] f32; prepared: prepare_params(params) output."""
    w1, b1 = prepared["w1"], prepared["b1"]
    w2, b2 = prepared["w2"], prepared["b2"]
    w3, b3 = prepared["w3"], prepared["b3"]

    B, S = x.shape
    F1p = w1.shape[1]
    F2p = w2.shape[1]
    Ap = w3.shape[1]
    assert w1.shape[0] == S

    bt, Bp, nsteps = _choose_batch_tiling(B, batch_tile)
    xp = x if Bp == B else jnp.pad(x, ((0, Bp - B), (0, 0)))

    # Constant index_map -> weights/biases DMA'd once, VMEM-resident across
    # the whole batch grid.
    resident = lambda shape: pl.BlockSpec(shape, lambda i: (0, 0))

    flops = 2 * Bp * (S * F1p + F1p * F2p + F2p * Ap)
    transcendentals = Bp * Ap  # tanh
    bytes_accessed = (Bp * S * 4                                 # x (f32)
                      + Bp * Ap * jnp.dtype(out_dtype).itemsize  # output
                      + 2 * (S * F1p + F1p * F2p + F2p * Ap)     # bf16 weights
                      + 4 * (F1p + F2p + Ap))                    # f32 biases

    out = pl.pallas_call(
        _ddpg_actor_kernel,
        out_shape=jax.ShapeDtypeStruct((Bp, Ap), out_dtype),
        grid_spec=pltpu.PrefetchScalarGridSpec(
            num_scalar_prefetch=0,
            grid=(nsteps,),
            in_specs=[
                pl.BlockSpec((bt, S), lambda i: (i, 0)),  # x (pipelined, f32)
                resident((S, F1p)),    # w1  (bf16, lane-padded)
                resident((1, F1p)),    # b1  (f32)
                resident((F1p, F2p)),  # w2
                resident((1, F2p)),    # b2
                resident((F2p, Ap)),   # w3
                resident((1, Ap)),     # b3
            ],
            out_specs=pl.BlockSpec((bt, Ap), lambda i: (i, 0)),
        ),
        compiler_params=pltpu.CompilerParams(
            dimension_semantics=("parallel",)),
        cost_estimate=pl.CostEstimate(
            flops=flops,
            transcendentals=transcendentals,
            bytes_accessed=bytes_accessed),
    )(xp, w1, b1, w2, b2, w3, b3)

    return out[:B, :action_size]


# --------------------------------------------------------------------------
# Init + references
# --------------------------------------------------------------------------
def init_params(key, state_size, action_size, fc1_units, fc2_units):
    """PyTorch nn.Linear default init: U(-1/sqrt(fan_in), 1/sqrt(fan_in))."""
    ks = jax.random.split(key, 6)

    def lin(kw, kb, fan_in, fan_out):
        bound = 1.0 / math.sqrt(fan_in)
        w = jax.random.uniform(kw, (fan_in, fan_out), jnp.float32,
                               minval=-bound, maxval=bound)
        b = jax.random.uniform(kb, (1, fan_out), jnp.float32,
                               minval=-bound, maxval=bound)
        return w, b

    w1, b1 = lin(ks[0], ks[1], state_size, fc1_units)
    w2, b2 = lin(ks[2], ks[3], fc1_units, fc2_units)
    w3, b3 = lin(ks[4], ks[5], fc2_units, action_size)
    return dict(w1=w1, b1=b1, w2=w2, b2=b2, w3=w3, b3=b3)


def reference_forward_f32(x, p):
    h1 = jnp.maximum(x @ p["w1"] + p["b1"], 0.0)
    h2 = jnp.maximum(h1 @ p["w2"] + p["b2"], 0.0)
    return jnp.tanh(h2 @ p["w3"] + p["b3"])


def reference_forward_bf16(x, p):
    """Same bf16-input / f32-accumulate quantization as the kernel."""
    bf = jnp.bfloat16
    h1 = jnp.dot(x.astype(bf), p["w1"].astype(bf),
                 preferred_element_type=jnp.float32) + p["b1"]
    h1 = jnp.maximum(h1, 0.0)
    h2 = jnp.dot(h1.astype(bf), p["w2"].astype(bf),
                 preferred_element_type=jnp.float32) + p["b2"]
    h2 = jnp.maximum(h2, 0.0)
    o = jnp.dot(h2.astype(bf), p["w3"].astype(bf),
                preferred_element_type=jnp.float32) + p["b3"]
    return jnp.tanh(o)


if __name__ == "__main__":
    # Small shapes consistent with DDPGActor(args)
    batch = 8
    state_size = 32
    action_size = 8
    fc1_units = 64
    fc2_units = 32

    key = jax.random.PRNGKey(0)
    kx, kp = jax.random.split(key)
    x = jax.random.normal(kx, (batch, state_size), jnp.float32)
    params = init_params(kp, state_size, action_size, fc1_units, fc2_units)

    prepared = prepare_params(params)   # one-time bf16 cast + lane padding
    out = jax.block_until_ready(
        ddpg_actor_forward(x, prepared, action_size=action_size))
    assert out.shape == (batch, action_size)
    assert out.dtype == jnp.float32

    ref_q = reference_forward_bf16(x, params)     # kernel-matched quantization
    assert jnp.allclose(out, ref_q, atol=1e-3, rtol=1e-3), \
        "mismatch vs bf16-quantized reference"

    ref_f = reference_forward_f32(x, params)      # PyTorch f32 semantics
    assert jnp.allclose(out, ref_f, atol=5e-2, rtol=5e-2), \
        "mismatch vs f32 reference"

    print("KERNEL_OK")
</pallas_src>

<mosaic_0001>
module attributes {stable_mosaic.version = 11 : i64} {
  func.func @_ddpg_actor_kernel(%arg0: i32, %arg1: memref<16x32xf32, #tpu.memory_space<vmem>>, %arg2: memref<32x128xbf16, #tpu.memory_space<vmem>>, %arg3: memref<1x128xf32, #tpu.memory_space<vmem>>, %arg4: memref<128x128xbf16, #tpu.memory_space<vmem>>, %arg5: memref<1x128xf32, #tpu.memory_space<vmem>>, %arg6: memref<128x128xbf16, #tpu.memory_space<vmem>>, %arg7: memref<1x128xf32, #tpu.memory_space<vmem>>, %arg8: memref<16x128xf32, #tpu.memory_space<vmem>>) attributes {dimension_semantics = [#tpu.dimension_semantics<parallel>], iteration_bounds = array<i64: 1>, scalar_prefetch = 0 : i64, scratch_operands = 0 : i64, tpu.core_type = #tpu.core_type<tc>, window_params = [{transform_indices = @transform_0, window_bounds = array<i64: 16, 32>}, {pipeline_mode = #tpu.pipeline_mode<synchronous>, transform_indices = @transform_1, window_bounds = array<i64: 32, 128>}, {pipeline_mode = #tpu.pipeline_mode<synchronous>, transform_indices = @transform_2, window_bounds = array<i64: 1, 128>}, {pipeline_mode = #tpu.pipeline_mode<synchronous>, transform_indices = @transform_3, window_bounds = array<i64: 128, 128>}, {pipeline_mode = #tpu.pipeline_mode<synchronous>, transform_indices = @transform_4, window_bounds = array<i64: 1, 128>}, {pipeline_mode = #tpu.pipeline_mode<synchronous>, transform_indices = @transform_5, window_bounds = array<i64: 128, 128>}, {pipeline_mode = #tpu.pipeline_mode<synchronous>, transform_indices = @transform_6, window_bounds = array<i64: 1, 128>}, {transform_indices = @transform_7, window_bounds = array<i64: 16, 128>}]} {
    %c0 = arith.constant 0 : index
    %c0_0 = arith.constant 0 : index
    %0 = vector.load %arg1[%c0, %c0_0] : memref<16x32xf32, #tpu.memory_space<vmem>>, vector<16x32xf32>
    %1 = arith.truncf %0 : vector<16x32xf32> to vector<16x32xbf16>
    %c0_1 = arith.constant 0 : index
    %c0_2 = arith.constant 0 : index
    %2 = vector.load %arg2[%c0_1, %c0_2] : memref<32x128xbf16, #tpu.memory_space<vmem>>, vector<32x128xbf16>
    %cst = arith.constant dense<0.000000e+00> : vector<16x128xf32>
    %3 = tpu.matmul %1, %2, %cst {dimension_numbers = #tpu.dot_dimension_numbers<[1], [0], [0], [1], [0, 0, 1, 1], [], []>} : vector<16x32xbf16>, vector<32x128xbf16>, vector<16x128xf32> -> vector<16x128xf32>
    %c0_3 = arith.constant 0 : index
    %c0_4 = arith.constant 0 : index
    %4 = vector.load %arg3[%c0_3, %c0_4] : memref<1x128xf32, #tpu.memory_space<vmem>>, vector<1x128xf32>
    %5 = vector.broadcast %4 : vector<1x128xf32> to vector<16x128xf32>
    %6 = arith.addf %3, %5 : vector<16x128xf32>
    %cst_5 = arith.constant 0.000000e+00 : f32
    %7 = vector.broadcast %cst_5 : f32 to vector<16x128xf32>
    %8 = arith.maximumf %6, %7 : vector<16x128xf32>
    %9 = arith.truncf %8 : vector<16x128xf32> to vector<16x128xbf16>
    %c0_6 = arith.constant 0 : index
    %c0_7 = arith.constant 0 : index
    %10 = vector.load %arg4[%c0_6, %c0_7] : memref<128x128xbf16, #tpu.memory_space<vmem>>, vector<128x128xbf16>
    %cst_8 = arith.constant dense<0.000000e+00> : vector<16x128xf32>
    %11 = tpu.matmul %9, %10, %cst_8 {dimension_numbers = #tpu.dot_dimension_numbers<[1], [0], [0], [1], [0, 0, 1, 1], [], []>} : vector<16x128xbf16>, vector<128x128xbf16>, vector<16x128xf32> -> vector<16x128xf32>
    %c0_9 = arith.constant 0 : index
    %c0_10 = arith.constant 0 : index
    %12 = vector.load %arg5[%c0_9, %c0_10] : memref<1x128xf32, #tpu.memory_space<vmem>>, vector<1x128xf32>
    %13 = vector.broadcast %12 : vector<1x128xf32> to vector<16x128xf32>
    %14 = arith.addf %11, %13 : vector<16x128xf32>
    %cst_11 = arith.constant 0.000000e+00 : f32
    %15 = vector.broadcast %cst_11 : f32 to vector<16x128xf32>
    %16 = arith.maximumf %14, %15 : vector<16x128xf32>
    %17 = arith.truncf %16 : vector<16x128xf32> to vector<16x128xbf16>
    %c0_12 = arith.constant 0 : index
    %c0_13 = arith.constant 0 : index
    %18 = vector.load %arg6[%c0_12, %c0_13] : memref<128x128xbf16, #tpu.memory_space<vmem>>, vector<128x128xbf16>
    %cst_14 = arith.constant dense<0.000000e+00> : vector<16x128xf32>
    %19 = tpu.matmul %17, %18, %cst_14 {dimension_numbers = #tpu.dot_dimension_numbers<[1], [0], [0], [1], [0, 0, 1, 1], [], []>} : vector<16x128xbf16>, vector<128x128xbf16>, vector<16x128xf32> -> vector<16x128xf32>
    %c0_15 = arith.constant 0 : index
    %c0_16 = arith.constant 0 : index
    %20 = vector.load %arg7[%c0_15, %c0_16] : memref<1x128xf32, #tpu.memory_space<vmem>>, vector<1x128xf32>
    %21 = vector.broadcast %20 : vector<1x128xf32> to vector<16x128xf32>
    %22 = arith.addf %19, %21 : vector<16x128xf32>
    %23 = math.tanh %22 : vector<16x128xf32>
    %c0_17 = arith.constant 0 : index
    %c0_18 = arith.constant 0 : index
    %24 = vector.load %arg8[%c0_17, %c0_18] : memref<16x128xf32, #tpu.memory_space<vmem>>, vector<16x128xf32>
    tpu.vector_store %arg8[%c0_17, %c0_18], %23 {strides = array<i32>} : memref<16x128xf32, #tpu.memory_space<vmem>>, vector<16x128xf32>,
    return
  }
  func.func @transform_0(%arg0: i32) -> (i32, i32) {
    %c0_i32 = arith.constant 0 : i32
    %c0_i32_0 = arith.constant 0 : i32
    return %arg0, %c0_i32 : i32, i32
  }
  func.func @transform_1(%arg0: i32) -> (i32, i32) {
    %c0_i32 = arith.constant 0 : i32
    %c0_i32_0 = arith.constant 0 : i32
    %c0_i32_1 = arith.constant 0 : i32
    return %c0_i32, %c0_i32_0 : i32, i32
  }
  func.func @transform_2(%arg0: i32) -> (i32, i32) {
    %c0_i32 = arith.constant 0 : i32
    %c0_i32_0 = arith.constant 0 : i32
    %c0_i32_1 = arith.constant 0 : i32
    return %c0_i32, %c0_i32_0 : i32, i32
  }
  func.func @transform_3(%arg0: i32) -> (i32, i32) {
    %c0_i32 = arith.constant 0 : i32
    %c0_i32_0 = arith.constant 0 : i32
    %c0_i32_1 = arith.constant 0 : i32
    return %c0_i32, %c0_i32_0 : i32, i32
  }
  func.func @transform_4(%arg0: i32) -> (i32, i32) {
    %c0_i32 = arith.constant 0 : i32
    %c0_i32_0 = arith.constant 0 : i32
    %c0_i32_1 = arith.constant 0 : i32
    return %c0_i32, %c0_i32_0 : i32, i32
  }
  func.func @transform_5(%arg0: i32) -> (i32, i32) {
    %c0_i32 = arith.constant 0 : i32
    %c0_i32_0 = arith.constant 0 : i32
    %c0_i32_1 = arith.constant 0 : i32
    return %c0_i32, %c0_i32_0 : i32, i32
  }
  func.func @transform_6(%arg0: i32) -> (i32, i32) {
    %c0_i32 = arith.constant 0 : i32
    %c0_i32_0 = arith.constant 0 : i32
    %c0_i32_1 = arith.constant 0 : i32
    return %c0_i32, %c0_i32_0 : i32, i32
  }
  func.func @transform_7(%arg0: i32) -> (i32, i32) {
    %c0_i32 = arith.constant 0 : i32
    %c0_i32_0 = arith.constant 0 : i32
    return %arg0, %c0_i32 : i32, i32
  }
}

</mosaic_0001>

<llo_original>
// kernel: ddpg_actor_forward.1
$region0: #{ddpg_actor_forward.1}
  #allocation0 [shape = 'u32[]', space=smem, size = 0x4, offset = 0x4, fixed_abs, tag = 'smem constant byte address 0x4 - core index']
  #allocation1 [shape = 'u32[72,128]{1,0:T(1,128)}', space=vmem, size = 0x9000, scoped, tag = 'internal scratch']
  %s0 = inlined_call_operand.vmem [shape: f32[16,32], index: 0, kind: input, shape index: {}]
  %s1 = inlined_call_operand.vmem [shape: bf16[32,128], index: 1, kind: input, shape index: {}]
  %s2 = inlined_call_operand.vmem [shape: f32[1,128], index: 2, kind: input, shape index: {}]
  %s3 = inlined_call_operand.hbm [shape: bf16[128,128], index: 3, kind: input, shape index: {}]
  %s4 = inlined_call_operand.vmem [shape: f32[1,128], index: 4, kind: input, shape index: {}]
  %s5 = inlined_call_operand.hbm [shape: bf16[128,128], index: 5, kind: input, shape index: {}]
  %s6 = inlined_call_operand.vmem [shape: f32[1,128], index: 6, kind: input, shape index: {}]
  %s7 = inlined_call_operand.vmem [shape: f32[16,128], index: 7, kind: output, shape index: {}]
  %s8 = sld [smem:[#allocation0]]
  $region46: #{ddpg_actor_forward.1} parent=0
    _
  %s10 = ssub.s32 1, %s8
  %s11 = scalar_select 0, %s10, %s8
  $region1: #{ddpg_actor_forward.1} parent=0
    #allocation2 [shape = 'u8[32768]{0}', space=vmem, size = 0x8000, scoped, tag = 'input window, operand 3, single buffered']
    #allocation3 [shape = 's32[1]{0}', space=sflag, size = 0x4, scoped, tag = 'scoped memory for ddpg_actor_forward.1']
    #allocation4 [shape = 'u8[32768]{0}', space=vmem, size = 0x8000, scoped, tag = 'input window, operand 5, single buffered']
    #allocation5 [shape = 's32[1]{0}', space=sflag, size = 0x4, scoped, tag = 'scoped memory for ddpg_actor_forward.1']
    %12 = vsyncpa [#allocation3], 0
    %13 = vsyncpa [#allocation5], 0
    // Predicated region
    $region2: #{ddpg_actor_forward.1} parent=1 // pred_check
      _
    $region3: #{ddpg_actor_forward.1} parent=1 // pred_check_branch
      %15 = sbr.rel (0) target = $region5
    $region4: #{ddpg_actor_forward.1} parent=1 // pred_region
      _
    $region5: #{ddpg_actor_forward.1} parent=1 // pred_fallthru
      _
    // Predicated region
    $region6: #{ddpg_actor_forward.1} parent=1 // pred_check
      _
    $region7: #{ddpg_actor_forward.1} parent=1 // pred_check_branch
      %17 = sbr.rel (0) target = $region9
    $region8: #{ddpg_actor_forward.1} parent=1 // pred_region
      _
    $region9: #{ddpg_actor_forward.1} parent=1 // pred_fallthru
      _
    // Predicated region
    $region10: #{ddpg_actor_forward.1} parent=1 // pred_check
      _
    $region11: #{ddpg_actor_forward.1} parent=1 // pred_check_branch
      %19 = sbr.rel (0) target = $region13
    $region12: #{ddpg_actor_forward.1} parent=1 // pred_region
      _
    $region13: #{ddpg_actor_forward.1} parent=1 // pred_fallthru
      _
    // Predicated region
    $region14: #{ddpg_actor_forward.1} parent=1 // pred_check
      _
    $region15: #{ddpg_actor_forward.1} parent=1 // pred_check_branch
      %21 = sbr.rel (0) target = $region17
    $region16: #{ddpg_actor_forward.1} parent=1 // pred_region
      %23 = vsyncadd [#allocation3], 0
      %s24 = sshll.u32 %s3, 4
      %s25 = int_to_ptr.hbm [resolvable:$true] %s24
      %s26 = sshll.u32 [#allocation2], 4
      %s27 = int_to_ptr.vmem [resolvable:$true] %s26
      %32 = dma.hbm_to_vmem [thread:$0]  %s25, 1024, %s27, [#allocation3], 64, 64, 4
    $region17: #{ddpg_actor_forward.1} parent=1 // pred_fallthru
      _
    // Predicated region
    $region18: #{ddpg_actor_forward.1} parent=1 // pred_check
      _
    $region19: #{ddpg_actor_forward.1} parent=1 // pred_check_branch
      %34 = sbr.rel (0) target = $region21
    $region20: #{ddpg_actor_forward.1} parent=1 // pred_region
      _
    $region21: #{ddpg_actor_forward.1} parent=1 // pred_fallthru
      _
    // Predicated region
    $region22: #{ddpg_actor_forward.1} parent=1 // pred_check
      _
    $region23: #{ddpg_actor_forward.1} parent=1 // pred_check_branch
      %36 = sbr.rel (0) target = $region25
    $region24: #{ddpg_actor_forward.1} parent=1 // pred_region
      %38 = vsyncadd [#allocation5], 0
      %s39 = sshll.u32 %s5, 4
      %s40 = int_to_ptr.hbm [resolvable:$true] %s39
      %s41 = sshll.u32 [#allocation4], 4
      %s42 = int_to_ptr.vmem [resolvable:$true] %s41
      %47 = dma.hbm_to_vmem [thread:$0]  %s40, 1024, %s42, [#allocation5], 64, 64, 4
    $region25: #{ddpg_actor_forward.1} parent=1 // pred_fallthru
      _
    // Predicated region
    $region26: #{ddpg_actor_forward.1} parent=1 // pred_check
      _
    $region27: #{ddpg_actor_forward.1} parent=1 // pred_check_branch
      %49 = sbr.rel (0) target = $region29
    $region28: #{ddpg_actor_forward.1} parent=1 // pred_region
      _
    $region29: #{ddpg_actor_forward.1} parent=1 // pred_fallthru
      _
    // Predicated region
    $region30: #{ddpg_actor_forward.1} parent=1 // pred_check
      _
    $region31: #{ddpg_actor_forward.1} parent=1 // pred_check_branch
      %51 = sbr.rel (0) target = $region33
    $region32: #{ddpg_actor_forward.1} parent=1 // pred_region
      %53 = dma.done [#allocation3], 1024
    $region33: #{ddpg_actor_forward.1} parent=1 // pred_fallthru
      _
    // Predicated region
    $region34: #{ddpg_actor_forward.1} parent=1 // pred_check
      _
    $region35: #{ddpg_actor_forward.1} parent=1 // pred_check_branch
      %55 = sbr.rel (0) target = $region37
    $region36: #{ddpg_actor_forward.1} parent=1 // pred_region
      %57 = dma.done [#allocation5], 1024
    $region37: #{ddpg_actor_forward.1} parent=1 // pred_fallthru
      _
    %v59 = vld [vmem:[%s0] sm:$0xff]
    %v60 = vld [vmem:[%s0 + $0x8] sm:$0xff]
    %v61 = vpack.c.bf16 %v60, %v59
    %v62 = vld [vmem:[%s1] sm:$0xf]
    %v63 = vld [vmem:[%s1 + $0x4] sm:$0xf]
    %v64 = vld [vmem:[%s1 + $0x8] sm:$0xf]
    %v65 = vld [vmem:[%s1 + $0xc] sm:$0xf]
    %v66 = vld [vmem:[%s2] sm:$0x1]
    %v68 = vperm.slane %v66, 0
    %v74 = vunpack.c.l.b16 %v62
    %v75 = vunpack.c.l.b16 %v63
    %v76 = vunpack.c.l.b16 %v64
    %v77 = vunpack.c.l.b16 %v65
    %v78 = vpack.c.b16 %v75, %v74
    %v79 = vpack.c.b16 %v77, %v76
    %vm82 = vcmask 261120
    %v84 = vsel %vm82, %v61, 0
    %86 = vmatpush.bf16.msra.mxu0 0
    %87 = vmatpush.bf16.msra.mxu0 0
    %88 = vmatpush.bf16.msra.mxu0 0
    %89 = vmatpush.bf16.msra.mxu0 0
    %90 = vmatpush.bf16.msra.mxu0 0
    %91 = vmatpush.bf16.msra.mxu0 0
    %92 = vmatpush.bf16.msra.mxu0 %v79
    %93 = vmatpush.bf16.msra.mxu0 %v78
    %94 = vmatmul.bf16.gmra.mxu0 %v84
    %v95 = vpop.f32.mrf.mxu0
    %v96 = vadd.f32 %v68, %v95
    %v97 = vpop.f32.mrf.mxu0
    %v98 = vadd.f32 %v68, %v97
    %99 = vdwg.mxu0
    %v100 = vmax.f32 %v96, 0.0
    %v101 = vmax.f32 %v98, 0.0
    %v102 = vpack.c.bf16 %v101, %v100
    %v103 = vld [vmem:[#allocation2] sm:$0xf]
    %v104 = vld [vmem:[#allocation2 + $0x4] sm:$0xf]
    %v105 = vld [vmem:[#allocation2 + $0x8] sm:$0xf]
    %v106 = vld [vmem:[#allocation2 + $0xc] sm:$0xf]
    %v107 = vld [vmem:[#allocation2 + $0x10] sm:$0xf]
    %v108 = vld [vmem:[#allocation2 + $0x14] sm:$0xf]
    %v109 = vld [vmem:[#allocation2 + $0x18] sm:$0xf]
    %v110 = vld [vmem:[#allocation2 + $0x1c] sm:$0xf]
    %v111 = vld [vmem:[#allocation2 + $0x20] sm:$0xf]
    %v112 = vld [vmem:[#allocation2 + $0x24] sm:$0xf]
    %v113 = vld [vmem:[#allocation2 + $0x28] sm:$0xf]
    %v114 = vld [vmem:[#allocation2 + $0x2c] sm:$0xf]
    %v115 = vld [vmem:[#allocation2 + $0x30] sm:$0xf]
    %v116 = vld [vmem:[#allocation2 + $0x34] sm:$0xf]
    %v117 = vld [vmem:[#allocation2 + $0x38] sm:$0xf]
    %v118 = vld [vmem:[#allocation2 + $0x3c] sm:$0xf]
    %v119 = vld [vmem:[%s4] sm:$0x1]
    %v121 = vperm.slane %v119, 0
    %v139 = vunpack.c.l.b16 %v103
    %v140 = vunpack.c.l.b16 %v104
    %v141 = vunpack.c.l.b16 %v105
    %v142 = vunpack.c.l.b16 %v106
    %v143 = vunpack.c.l.b16 %v107
    %v144 = vunpack.c.l.b16 %v108
    %v145 = vunpack.c.l.b16 %v109
    %v146 = vunpack.c.l.b16 %v110
    %v147 = vunpack.c.l.b16 %v111
    %v148 = vunpack.c.l.b16 %v112
    %v149 = vunpack.c.l.b16 %v113
    %v150 = vunpack.c.l.b16 %v114
    %v151 = vunpack.c.l.b16 %v115
    %v152 = vunpack.c.l.b16 %v116
    %v153 = vunpack.c.l.b16 %v117
    %v154 = vunpack.c.l.b16 %v118
    %v155 = vpack.c.b16 %v140, %v139
    %v156 = vpack.c.b16 %v142, %v141
    %v157 = vpack.c.b16 %v144, %v143
    %v158 = vpack.c.b16 %v146, %v145
    %v159 = vpack.c.b16 %v148, %v147
    %v160 = vpack.c.b16 %v150, %v149
    %v161 = vpack.c.b16 %v152, %v151
    %v162 = vpack.c.b16 %v154, %v153
    %171 = vmatpush.bf16.msra.mxu0 %v162
    %172 = vmatpush.bf16.msra.mxu0 %v161
    %173 = vmatpush.bf16.msra.mxu0 %v160
    %174 = vmatpush.bf16.msra.mxu0 %v159
    %175 = vmatpush.bf16.msra.mxu0 %v158
    %176 = vmatpush.bf16.msra.mxu0 %v157
    %177 = vmatpush.bf16.msra.mxu0 %v156
    %178 = vmatpush.bf16.msra.mxu0 %v155
    %179 = vmatmul.bf16.gmra.mxu0 %v102
    %v180 = vpop.f32.mrf.mxu0
    %v181 = vadd.f32 %v121, %v180
    %v182 = vpop.f32.mrf.mxu0
    %v183 = vadd.f32 %v121, %v182
    %184 = vdwg.mxu0
    %v185 = vmax.f32 %v181, 0.0
    %v186 = vmax.f32 %v183, 0.0
    %v187 = vpack.c.bf16 %v186, %v185
    %v188 = vld [vmem:[#allocation4] sm:$0xf]
    %v189 = vld [vmem:[#allocation4 + $0x4] sm:$0xf]
    %v190 = vld [vmem:[#allocation4 + $0x8] sm:$0xf]
    %v191 = vld [vmem:[#allocation4 + $0xc] sm:$0xf]
    %v192 = vld [vmem:[#allocation4 + $0x10] sm:$0xf]
    %v193 = vld [vmem:[#allocation4 + $0x14] sm:$0xf]
    %v194 = vld [vmem:[#allocation4 + $0x18] sm:$0xf]
    %v195 = vld [vmem:[#allocation4 + $0x1c] sm:$0xf]
    %v196 = vld [vmem:[#allocation4 + $0x20] sm:$0xf]
    %v197 = vld [vmem:[#allocation4 + $0x24] sm:$0xf]
    %v198 = vld [vmem:[#allocation4 + $0x28] sm:$0xf]
    %v199 = vld [vmem:[#allocation4 + $0x2c] sm:$0xf]
    %v200 = vld [vmem:[#allocation4 + $0x30] sm:$0xf]
    %v201 = vld [vmem:[#allocation4 + $0x34] sm:$0xf]
    %v202 = vld [vmem:[#allocation4 + $0x38] sm:$0xf]
    %v203 = vld [vmem:[#allocation4 + $0x3c] sm:$0xf]
    %v204 = vld [vmem:[%s6] sm:$0x1]
    %v206 = vperm.slane %v204, 0
    %v224 = vunpack.c.l.b16 %v188
    %v225 = vunpack.c.l.b16 %v189
    %v226 = vunpack.c.l.b16 %v190
    %v227 = vunpack.c.l.b16 %v191
    %v228 = vunpack.c.l.b16 %v192
    %v229 = vunpack.c.l.b16 %v193
    %v230 = vunpack.c.l.b16 %v194
    %v231 = vunpack.c.l.b16 %v195
    %v232 = vunpack.c.l.b16 %v196
    %v233 = vunpack.c.l.b16 %v197
    %v234 = vunpack.c.l.b16 %v198
    %v235 = vunpack.c.l.b16 %v199
    %v236 = vunpack.c.l.b16 %v200
    %v237 = vunpack.c.l.b16 %v201
    %v238 = vunpack.c.l.b16 %v202
    %v239 = vunpack.c.l.b16 %v203
    %v240 = vpack.c.b16 %v225, %v224
    %v241 = vpack.c.b16 %v227, %v226
    %v242 = vpack.c.b16 %v229, %v228
    %v243 = vpack.c.b16 %v231, %v230
    %v244 = vpack.c.b16 %v233, %v232
    %v245 = vpack.c.b16 %v235, %v234
    %v246 = vpack.c.b16 %v237, %v236
    %v247 = vpack.c.b16 %v239, %v238
    %256 = vmatpush.bf16.msra.mxu0 %v247
    %257 = vmatpush.bf16.msra.mxu0 %v246
    %258 = vmatpush.bf16.msra.mxu0 %v245
    %259 = vmatpush.bf16.msra.mxu0 %v244
    %260 = vmatpush.bf16.msra.mxu0 %v243
    %261 = vmatpush.bf16.msra.mxu0 %v242
    %262 = vmatpush.bf16.msra.mxu0 %v241
    %263 = vmatpush.bf16.msra.mxu0 %v240
    %264 = vmatmul.bf16.gmra.mxu0 %v187
    %v265 = vpop.f32.mrf.mxu0
    %v266 = vadd.f32 %v206, %v265
    %v267 = vpop.f32.mrf.mxu0
    %v268 = vadd.f32 %v206, %v267
    %269 = vdwg.mxu0
    %v270 = vtanh.pop %v266
    %v271 = vtanh.pop %v268
    %272 = vst [vmem:[%s7] sm:$0xff] %v270
    %273 = vst [vmem:[%s7 + $0x8] sm:$0xff] %v271
    // Predicated region
    $region38: #{ddpg_actor_forward.1} parent=1 // pred_check
      _
    $region39: #{ddpg_actor_forward.1} parent=1 // pred_check_branch
      %275 = sbr.rel (0) target = $region41
    $region40: #{ddpg_actor_forward.1} parent=1 // pred_region
      _
    $region41: #{ddpg_actor_forward.1} parent=1 // pred_fallthru
      _
    // Predicated region
    $region42: #{ddpg_actor_forward.1} parent=1 // pred_check
      _
    $region43: #{ddpg_actor_forward.1} parent=1 // pred_check_branch
      %277 = sbr.rel (0) target = $region45
    $region44: #{ddpg_actor_forward.1} parent=1 // pred_region
      _
    $region45: #{ddpg_actor_forward.1} parent=1 // pred_fallthru
      _
    %278 = vsyncpa [#allocation3], 1
    %279 = vsyncpa [#allocation5], 1

</llo_original>
